<compile_context>
chip_gen: v7x
topology: tpu7x:2x2x1
jax: 0.10.0
libtpu: 0.0.40
codegen_flags: <defaults>
</compile_context>

<pallas_src>
import jax
import jax.numpy as jnp
from jax.experimental import pallas as pl
from jax.experimental.pallas import tpu as pltpu


def _encoder_kernel(x_ref, y_ref, w1x_ref, w1y_ref, b1_ref,
                    w2_ref, b2_ref, w3_ref, b3_ref, r_ref):
    """One row tile: three fused (matmul + bias + ReLU) stages."""
    # Feed the MXU in the weights' dtype (bf16), accumulate in f32,
    # do bias + ReLU in f32.
    xb = x_ref[...].astype(w1x_ref.dtype)
    yb = y_ref[...].astype(w1y_ref.dtype)

    h = jnp.dot(xb, w1x_ref[...], preferred_element_type=jnp.float32)
    h = h + jnp.dot(yb, w1y_ref[...], preferred_element_type=jnp.float32)
    h = jnp.maximum(h + b1_ref[...], 0.0)

    h = jnp.dot(h.astype(w2_ref.dtype), w2_ref[...],
                preferred_element_type=jnp.float32)
    h = jnp.maximum(h + b2_ref[...], 0.0)

    r = jnp.dot(h.astype(w3_ref.dtype), w3_ref[...],
                preferred_element_type=jnp.float32)
    r = jnp.maximum(r + b3_ref[...], 0.0)

    r_ref[...] = r.astype(r_ref.dtype)


def _fold_bn(w, b, gamma, beta, mean, var, eps):
    """Fold inference-mode BatchNorm1d into a Linear stored as (in, out).

    Done entirely in f32; the caller casts to the kernel weight dtype after.
    """
    w = w.astype(jnp.float32)
    b = b.astype(jnp.float32)
    s = gamma.astype(jnp.float32) * jax.lax.rsqrt(var.astype(jnp.float32) + eps)
    w_f = w * s[None, :]
    b_f = b * s + (beta.astype(jnp.float32) - mean.astype(jnp.float32) * s)
    return w_f, b_f


def _block_diag(w, p):
    """p copies of w on the block diagonal: (in, out) -> (p*in, p*out)."""
    if p == 1:
        return w
    return jnp.kron(jnp.eye(p, dtype=w.dtype), w)


def _round_up(v, m):
    return ((v + m - 1) // m) * m


def encoder_forward(x, y, layer_params, *, eps=1e-5, row_tile=2048,
                    weight_dtype=jnp.bfloat16, out_dtype=jnp.float32):
    """x: (B, N, x_dim); y: (B, N, y_dim).

    layer_params: 3 tuples (w, b, gamma, beta, running_mean, running_var),
    w stored as (in_dim, out_dim). Returns r: (B, N, r_dim).
    """
    B, N, x_dim = x.shape
    y_dim = y.shape[-1]
    M = B * N

    # Fold BatchNorm (running stats) into the Linears, in f32.
    w1, b1 = _fold_bn(*layer_params[0], eps)
    w2, b2 = _fold_bn(*layer_params[1], eps)
    w3, b3 = _fold_bn(*layer_params[2], eps)
    h_dim, h2_dim, r_dim = w1.shape[1], w2.shape[1], w3.shape[1]

    # Lane-density pack factor: fold p=8 consecutive rows into the lane axis
    # (free contiguous reshapes) so the output block is >= 128 lanes wide and
    # stores are unmasked.  Weights become block-diagonal so packed rows stay
    # independent.  Fall back to p=1 when B*N is not a multiple of 8.
    p = 8 if M % 8 == 0 else 1
    Mp = M // p

    x2 = x.reshape(Mp, p * x_dim)        # no concat / pad: free reshapes
    y2 = y.reshape(Mp, p * y_dim)

    w1x_p = _block_diag(w1[:x_dim], p).astype(weight_dtype)
    w1y_p = _block_diag(w1[x_dim:], p).astype(weight_dtype)
    w2_p = _block_diag(w2, p).astype(weight_dtype)
    w3_p = _block_diag(w3, p).astype(weight_dtype)
    b1_p = jnp.tile(b1, p).reshape(1, p * h_dim)     # biases stay f32
    b2_p = jnp.tile(b2, p).reshape(1, p * h2_dim)
    b3_p = jnp.tile(b3, p).reshape(1, p * r_dim)

    # Row tiling (in packed rows).  Large tiles amortize the ~0.35 us/step
    # grid overhead; keep >= 2 grid steps when possible so v7x's two
    # TensorCores both get work on the "parallel" axis.
    tg = max(8, (row_tile // p // 8) * 8)
    if tg >= Mp:
        tg = Mp                                      # single full block
        if Mp >= 16:
            tg = _round_up(pl.cdiv(Mp, 2), 8)        # split into 2 steps
    grid = (pl.cdiv(Mp, tg),)

    # VMEM budget (BlockSpec double-buffers every operand, weights included).
    bpe_in = jnp.dtype(x.dtype).itemsize
    bpe_w = jnp.dtype(weight_dtype).itemsize
    bpe_out = jnp.dtype(out_dtype).itemsize
    weight_bytes = (w1x_p.size + w1y_p.size + w2_p.size + w3_p.size) * bpe_w
    bias_bytes = (b1_p.size + b2_p.size + b3_p.size) * 4
    tile_bytes = tg * p * ((x_dim + y_dim) * bpe_in + r_dim * bpe_out)
    inter_bytes = tg * p * (h_dim + h2_dim) * 4
    vmem_need = 2 * (weight_bytes + bias_bytes + tile_bytes) + inter_bytes
    vmem_limit = int(min(max(2 * vmem_need, 16 * 2**20), 48 * 2**20))
    # TODO(synk): for much larger hidden dims, single-buffer the resident
    # weights (pipeline_mode=pl.Buffered(1)) to halve their footprint against
    # v7x's smaller 64 MiB VMEM.

    flops = 2 * Mp * p * p * (x_dim * h_dim + y_dim * h_dim
                              + h_dim * h2_dim + h2_dim * r_dim)
    bytes_accessed = (M * (x_dim + y_dim) * bpe_in + M * r_dim * bpe_out
                      + weight_bytes + bias_bytes)
    cost = pl.CostEstimate(flops=int(flops), transcendentals=0,
                           bytes_accessed=int(bytes_accessed))

    out = pl.pallas_call(
        _encoder_kernel,
        out_shape=jax.ShapeDtypeStruct((Mp, p * r_dim), out_dtype),
        grid_spec=pltpu.PrefetchScalarGridSpec(
            num_scalar_prefetch=0,
            grid=grid,
            in_specs=[
                # streamed row tiles of x and y
                pl.BlockSpec((tg, p * x_dim), lambda i: (i, 0)),
                pl.BlockSpec((tg, p * y_dim), lambda i: (i, 0)),
                # weights / biases: constant index maps -> resident in VMEM
                pl.BlockSpec((p * x_dim, p * h_dim), lambda i: (0, 0)),
                pl.BlockSpec((p * y_dim, p * h_dim), lambda i: (0, 0)),
                pl.BlockSpec((1, p * h_dim), lambda i: (0, 0)),
                pl.BlockSpec((p * h_dim, p * h2_dim), lambda i: (0, 0)),
                pl.BlockSpec((1, p * h2_dim), lambda i: (0, 0)),
                pl.BlockSpec((p * h2_dim, p * r_dim), lambda i: (0, 0)),
                pl.BlockSpec((1, p * r_dim), lambda i: (0, 0)),
            ],
            out_specs=pl.BlockSpec((tg, p * r_dim), lambda i: (i, 0)),
        ),
        compiler_params=pltpu.CompilerParams(
            dimension_semantics=("parallel",),
            vmem_limit_bytes=vmem_limit),
        cost_estimate=cost,
    )(x2, y2, w1x_p, w1y_p, b1_p, w2_p, b2_p, w3_p, b3_p)

    # (Mp, p*r_dim) row-major == (M, r_dim) row-major: free unpack.
    return out.reshape(B, N, r_dim)


def reference_forward(x, y, layer_params, *, eps=1e-5):
    """Pure-JAX f32 reference: Linear -> BN(running stats) -> ReLU, x3."""
    B, N, _ = x.shape
    h = jnp.concatenate([x, y], axis=-1).reshape(B * N, -1).astype(jnp.float32)
    for (w, b, gamma, beta, mean, var) in layer_params:
        z = h @ w.astype(jnp.float32) + b
        z = (z - mean) * jax.lax.rsqrt(var + eps) * gamma + beta
        h = jnp.maximum(z, 0.0)
    return h.reshape(B, N, -1)


def matched_reference(x, y, layer_params, *, eps=1e-5,
                      weight_dtype=jnp.bfloat16):
    """Reference mimicking the kernel numerics (bf16 weights/activations,
    f32 accumulation) for a tight correctness check."""
    B, N, x_dim = x.shape
    M = B * N

    def q(a):  # quantize to kernel dtype, compute in f32
        return a.astype(weight_dtype).astype(jnp.float32)

    w1, b1 = _fold_bn(*layer_params[0], eps)
    w2, b2 = _fold_bn(*layer_params[1], eps)
    w3, b3 = _fold_bn(*layer_params[2], eps)

    xf = q(x.reshape(M, x_dim))
    yf = q(y.reshape(M, -1))
    h = jnp.maximum(xf @ q(w1[:x_dim]) + yf @ q(w1[x_dim:]) + b1, 0.0)
    h = jnp.maximum(q(h) @ q(w2) + b2, 0.0)
    r = jnp.maximum(q(h) @ q(w3) + b3, 0.0)
    return r.reshape(B, N, -1)


if __name__ == "__main__":
    # Small shapes consistent with the module: x_dim=2, y_dim=2 -> in_dim=4,
    # h_dim=32, r_dim=16, batch=2, num_points=8.
    B, N, X_DIM, Y_DIM, H_DIM, R_DIM = 2, 8, 2, 2, 32, 16

    key = jax.random.PRNGKey(0)
    keys = jax.random.split(key, 2 + 3 * 6)
    k_iter = iter(keys)

    x = jax.random.normal(next(k_iter), (B, N, X_DIM), dtype=jnp.float32)
    y = jax.random.normal(next(k_iter), (B, N, Y_DIM), dtype=jnp.float32)

    def make_params(in_dim, out_dim):
        w = jax.random.normal(next(k_iter), (in_dim, out_dim),
                              dtype=jnp.float32) * (1.0 / in_dim) ** 0.5
        b = jax.random.normal(next(k_iter), (out_dim,), dtype=jnp.float32) * 0.01
        gamma = 1.0 + 0.1 * jax.random.normal(next(k_iter), (out_dim,),
                                              dtype=jnp.float32)
        beta = 0.1 * jax.random.normal(next(k_iter), (out_dim,),
                                       dtype=jnp.float32)
        mean = 0.1 * jax.random.normal(next(k_iter), (out_dim,),
                                       dtype=jnp.float32)
        var = jnp.abs(jax.random.normal(next(k_iter), (out_dim,),
                                        dtype=jnp.float32)) + 0.5
        return (w, b, gamma, beta, mean, var)

    layer_params = [
        make_params(X_DIM + Y_DIM, H_DIM),
        make_params(H_DIM, H_DIM),
        make_params(H_DIM, R_DIM),
    ]

    # Main path: B*N multiple of 8 -> lane-dense packed output.
    r = encoder_forward(x, y, layer_params)
    jax.block_until_ready(r)
    assert r.shape == (B, N, R_DIM), r.shape

    r_match = matched_reference(x, y, layer_params)
    assert jnp.allclose(r, r_match, atol=5e-3, rtol=5e-3), \
        "mismatch vs numerics-matched reference"

    r_ref = reference_forward(x, y, layer_params)
    assert jnp.allclose(r, r_ref, atol=5e-2, rtol=5e-2), \
        "mismatch vs f32 reference (bf16 tolerance)"

    # Fallback path: B*N not a multiple of 8 (p=1, partial row blocks).
    x_odd, y_odd = x[:, :7], y[:, :7]
    r_odd = encoder_forward(x_odd, y_odd, layer_params)
    jax.block_until_ready(r_odd)
    assert r_odd.shape == (B, 7, R_DIM), r_odd.shape
    assert jnp.allclose(r_odd, matched_reference(x_odd, y_odd, layer_params),
                        atol=5e-3, rtol=5e-3), "mismatch (fallback path)"

    print("KERNEL_OK")
</pallas_src>

<mosaic_0001>
module attributes {stable_mosaic.version = 11 : i64} {
  func.func @_encoder_kernel(%arg0: i32, %arg1: memref<2x16xf32, #tpu.memory_space<vmem>>, %arg2: memref<2x16xf32, #tpu.memory_space<vmem>>, %arg3: memref<16x256xbf16, #tpu.memory_space<vmem>>, %arg4: memref<16x256xbf16, #tpu.memory_space<vmem>>, %arg5: memref<1x256xf32, #tpu.memory_space<vmem>>, %arg6: memref<256x256xbf16, #tpu.memory_space<vmem>>, %arg7: memref<1x256xf32, #tpu.memory_space<vmem>>, %arg8: memref<256x128xbf16, #tpu.memory_space<vmem>>, %arg9: memref<1x128xf32, #tpu.memory_space<vmem>>, %arg10: memref<2x128xf32, #tpu.memory_space<vmem>>) attributes {dimension_semantics = [#tpu.dimension_semantics<parallel>], iteration_bounds = array<i64: 1>, scalar_prefetch = 0 : i64, scratch_operands = 0 : i64, tpu.core_type = #tpu.core_type<tc>, window_params = [{transform_indices = @transform_0, window_bounds = array<i64: 2, 16>}, {transform_indices = @transform_1, window_bounds = array<i64: 2, 16>}, {pipeline_mode = #tpu.pipeline_mode<synchronous>, transform_indices = @transform_2, window_bounds = array<i64: 16, 256>}, {pipeline_mode = #tpu.pipeline_mode<synchronous>, transform_indices = @transform_3, window_bounds = array<i64: 16, 256>}, {pipeline_mode = #tpu.pipeline_mode<synchronous>, transform_indices = @transform_4, window_bounds = array<i64: 1, 256>}, {pipeline_mode = #tpu.pipeline_mode<synchronous>, transform_indices = @transform_5, window_bounds = array<i64: 256, 256>}, {pipeline_mode = #tpu.pipeline_mode<synchronous>, transform_indices = @transform_6, window_bounds = array<i64: 1, 256>}, {pipeline_mode = #tpu.pipeline_mode<synchronous>, transform_indices = @transform_7, window_bounds = array<i64: 256, 128>}, {pipeline_mode = #tpu.pipeline_mode<synchronous>, transform_indices = @transform_8, window_bounds = array<i64: 1, 128>}, {transform_indices = @transform_9, window_bounds = array<i64: 2, 128>}]} {
    %c0 = arith.constant 0 : index
    %c0_0 = arith.constant 0 : index
    %0 = vector.load %arg1[%c0, %c0_0] : memref<2x16xf32, #tpu.memory_space<vmem>>, vector<2x16xf32>
    %1 = arith.truncf %0 : vector<2x16xf32> to vector<2x16xbf16>
    %c0_1 = arith.constant 0 : index
    %c0_2 = arith.constant 0 : index
    %2 = vector.load %arg2[%c0_1, %c0_2] : memref<2x16xf32, #tpu.memory_space<vmem>>, vector<2x16xf32>
    %3 = arith.truncf %2 : vector<2x16xf32> to vector<2x16xbf16>
    %c0_3 = arith.constant 0 : index
    %c0_4 = arith.constant 0 : index
    %4 = vector.load %arg3[%c0_3, %c0_4] : memref<16x256xbf16, #tpu.memory_space<vmem>>, vector<16x256xbf16>
    %cst = arith.constant dense<0.000000e+00> : vector<2x256xf32>
    %5 = tpu.matmul %1, %4, %cst {dimension_numbers = #tpu.dot_dimension_numbers<[1], [0], [0], [1], [0, 0, 1, 1], [], []>} : vector<2x16xbf16>, vector<16x256xbf16>, vector<2x256xf32> -> vector<2x256xf32>
    %c0_5 = arith.constant 0 : index
    %c0_6 = arith.constant 0 : index
    %6 = vector.load %arg4[%c0_5, %c0_6] : memref<16x256xbf16, #tpu.memory_space<vmem>>, vector<16x256xbf16>
    %cst_7 = arith.constant dense<0.000000e+00> : vector<2x256xf32>
    %7 = tpu.matmul %3, %6, %cst_7 {dimension_numbers = #tpu.dot_dimension_numbers<[1], [0], [0], [1], [0, 0, 1, 1], [], []>} : vector<2x16xbf16>, vector<16x256xbf16>, vector<2x256xf32> -> vector<2x256xf32>
    %8 = arith.addf %5, %7 : vector<2x256xf32>
    %c0_8 = arith.constant 0 : index
    %c0_9 = arith.constant 0 : index
    %9 = vector.load %arg5[%c0_8, %c0_9] : memref<1x256xf32, #tpu.memory_space<vmem>>, vector<1x256xf32>
    %10 = vector.broadcast %9 : vector<1x256xf32> to vector<2x256xf32>
    %11 = arith.addf %8, %10 : vector<2x256xf32>
    %cst_10 = arith.constant 0.000000e+00 : f32
    %12 = vector.broadcast %cst_10 : f32 to vector<2x256xf32>
    %13 = arith.maximumf %11, %12 : vector<2x256xf32>
    %14 = arith.truncf %13 : vector<2x256xf32> to vector<2x256xbf16>
    %c0_11 = arith.constant 0 : index
    %c0_12 = arith.constant 0 : index
    %15 = vector.load %arg6[%c0_11, %c0_12] : memref<256x256xbf16, #tpu.memory_space<vmem>>, vector<256x256xbf16>
    %cst_13 = arith.constant dense<0.000000e+00> : vector<2x256xf32>
    %16 = tpu.matmul %14, %15, %cst_13 {dimension_numbers = #tpu.dot_dimension_numbers<[1], [0], [0], [1], [0, 0, 1, 1], [], []>} : vector<2x256xbf16>, vector<256x256xbf16>, vector<2x256xf32> -> vector<2x256xf32>
    %c0_14 = arith.constant 0 : index
    %c0_15 = arith.constant 0 : index
    %17 = vector.load %arg7[%c0_14, %c0_15] : memref<1x256xf32, #tpu.memory_space<vmem>>, vector<1x256xf32>
    %18 = vector.broadcast %17 : vector<1x256xf32> to vector<2x256xf32>
    %19 = arith.addf %16, %18 : vector<2x256xf32>
    %cst_16 = arith.constant 0.000000e+00 : f32
    %20 = vector.broadcast %cst_16 : f32 to vector<2x256xf32>
    %21 = arith.maximumf %19, %20 : vector<2x256xf32>
    %22 = arith.truncf %21 : vector<2x256xf32> to vector<2x256xbf16>
    %c0_17 = arith.constant 0 : index
    %c0_18 = arith.constant 0 : index
    %23 = vector.load %arg8[%c0_17, %c0_18] : memref<256x128xbf16, #tpu.memory_space<vmem>>, vector<256x128xbf16>
    %cst_19 = arith.constant dense<0.000000e+00> : vector<2x128xf32>
    %24 = tpu.matmul %22, %23, %cst_19 {dimension_numbers = #tpu.dot_dimension_numbers<[1], [0], [0], [1], [0, 0, 1, 1], [], []>} : vector<2x256xbf16>, vector<256x128xbf16>, vector<2x128xf32> -> vector<2x128xf32>
    %c0_20 = arith.constant 0 : index
    %c0_21 = arith.constant 0 : index
    %25 = vector.load %arg9[%c0_20, %c0_21] : memref<1x128xf32, #tpu.memory_space<vmem>>, vector<1x128xf32>
    %26 = vector.broadcast %25 : vector<1x128xf32> to vector<2x128xf32>
    %27 = arith.addf %24, %26 : vector<2x128xf32>
    %cst_22 = arith.constant 0.000000e+00 : f32
    %28 = vector.broadcast %cst_22 : f32 to vector<2x128xf32>
    %29 = arith.maximumf %27, %28 : vector<2x128xf32>
    %c0_23 = arith.constant 0 : index
    %c0_24 = arith.constant 0 : index
    %30 = vector.load %arg10[%c0_23, %c0_24] : memref<2x128xf32, #tpu.memory_space<vmem>>, vector<2x128xf32>
    tpu.vector_store %arg10[%c0_23, %c0_24], %29 {strides = array<i32>} : memref<2x128xf32, #tpu.memory_space<vmem>>, vector<2x128xf32>,
    return
  }
  func.func @transform_0(%arg0: i32) -> (i32, i32) {
    %c0_i32 = arith.constant 0 : i32
    %c0_i32_0 = arith.constant 0 : i32
    return %arg0, %c0_i32 : i32, i32
  }
  func.func @transform_1(%arg0: i32) -> (i32, i32) {
    %c0_i32 = arith.constant 0 : i32
    %c0_i32_0 = arith.constant 0 : i32
    return %arg0, %c0_i32 : i32, i32
  }
  func.func @transform_2(%arg0: i32) -> (i32, i32) {
    %c0_i32 = arith.constant 0 : i32
    %c0_i32_0 = arith.constant 0 : i32
    %c0_i32_1 = arith.constant 0 : i32
    return %c0_i32, %c0_i32_0 : i32, i32
  }
  func.func @transform_3(%arg0: i32) -> (i32, i32) {
    %c0_i32 = arith.constant 0 : i32
    %c0_i32_0 = arith.constant 0 : i32
    %c0_i32_1 = arith.constant 0 : i32
    return %c0_i32, %c0_i32_0 : i32, i32
  }
  func.func @transform_4(%arg0: i32) -> (i32, i32) {
    %c0_i32 = arith.constant 0 : i32
    %c0_i32_0 = arith.constant 0 : i32
    %c0_i32_1 = arith.constant 0 : i32
    return %c0_i32, %c0_i32_0 : i32, i32
  }
  func.func @transform_5(%arg0: i32) -> (i32, i32) {
    %c0_i32 = arith.constant 0 : i32
    %c0_i32_0 = arith.constant 0 : i32
    %c0_i32_1 = arith.constant 0 : i32
    return %c0_i32, %c0_i32_0 : i32, i32
  }
  func.func @transform_6(%arg0: i32) -> (i32, i32) {
    %c0_i32 = arith.constant 0 : i32
    %c0_i32_0 = arith.constant 0 : i32
    %c0_i32_1 = arith.constant 0 : i32
    return %c0_i32, %c0_i32_0 : i32, i32
  }
  func.func @transform_7(%arg0: i32) -> (i32, i32) {
    %c0_i32 = arith.constant 0 : i32
    %c0_i32_0 = arith.constant 0 : i32
    %c0_i32_1 = arith.constant 0 : i32
    return %c0_i32, %c0_i32_0 : i32, i32
  }
  func.func @transform_8(%arg0: i32) -> (i32, i32) {
    %c0_i32 = arith.constant 0 : i32
    %c0_i32_0 = arith.constant 0 : i32
    %c0_i32_1 = arith.constant 0 : i32
    return %c0_i32, %c0_i32_0 : i32, i32
  }
  func.func @transform_9(%arg0: i32) -> (i32, i32) {
    %c0_i32 = arith.constant 0 : i32
    %c0_i32_0 = arith.constant 0 : i32
    return %arg0, %c0_i32 : i32, i32
  }
}

</mosaic_0001>

<llo_original>
// kernel: tpu_custom_call.1
$region0: #{tpu_custom_call.1}
  #allocation0 [shape = 'u32[]', space=smem, size = 0x4, offset = 0x4, fixed_abs, tag = 'smem constant byte address 0x4 - core index']
  #allocation1 [shape = 'u32[144,128]{1,0:T(1,128)}', space=vmem, size = 0x12000, scoped, tag = 'internal scratch']
  %s0 = inlined_call_operand.hbm [shape: f32[2,16], index: 0, kind: input, shape index: {}]
  %s1 = inlined_call_operand.vmem [shape: f32[2,16], index: 1, kind: input, shape index: {}]
  %s2 = inlined_call_operand.hbm [shape: bf16[16,256], index: 2, kind: input, shape index: {}]
  %s3 = inlined_call_operand.hbm [shape: bf16[16,256], index: 3, kind: input, shape index: {}]
  %s4 = inlined_call_operand.vmem [shape: f32[1,256], index: 4, kind: input, shape index: {}]
  %s5 = inlined_call_operand.hbm [shape: bf16[256,256], index: 5, kind: input, shape index: {}]
  %s6 = inlined_call_operand.vmem [shape: f32[1,256], index: 6, kind: input, shape index: {}]
  %s7 = inlined_call_operand.hbm [shape: bf16[256,128], index: 7, kind: input, shape index: {}]
  %s8 = inlined_call_operand.vmem [shape: f32[1,128], index: 8, kind: input, shape index: {}]
  %s9 = inlined_call_operand.hbm [shape: f32[2,128], index: 9, kind: output, shape index: {}]
  %s10 = sld [smem:[#allocation0]]
  $region66: #{tpu_custom_call.1} parent=0
    _
  %s12 = ssub.s32 1, %s10
  %s13 = scalar_select 0, %s12, %s10
  $region1: #{tpu_custom_call.1} parent=0
    #allocation2 [shape = 'u8[1024]{0}', space=vmem, size = 0x400, scoped, tag = 'input window, operand 0, single buffered']
    #allocation3 [shape = 's32[1]{0}', space=sflag, size = 0x4, scoped, tag = 'scoped memory for tpu_custom_call.1']
    #allocation4 [shape = 's32[1]{0}', space=sflag, size = 0x4, scoped, tag = 'scoped memory for tpu_custom_call.1']
    #allocation5 [shape = 'u8[8192]{0}', space=vmem, size = 0x2000, scoped, tag = 'input window, operand 2, single buffered']
    #allocation6 [shape = 's32[1]{0}', space=sflag, size = 0x4, scoped, tag = 'scoped memory for tpu_custom_call.1']
    #allocation7 [shape = 'u8[8192]{0}', space=vmem, size = 0x2000, scoped, tag = 'input window, operand 3, single buffered']
    #allocation8 [shape = 'u8[131072]{0}', space=vmem, size = 0x20000, scoped, tag = 'input window, operand 5, single buffered']
    #allocation9 [shape = 's32[1]{0}', space=sflag, size = 0x4, scoped, tag = 'scoped memory for tpu_custom_call.1']
    #allocation10 [shape = 'u8[65536]{0}', space=vmem, size = 0x10000, scoped, tag = 'input window, operand 7, single buffered']
    #allocation11 [shape = 'u8[1024]{0}', space=vmem, size = 0x400, scoped, tag = 'output window, operand 0, single buffered']
    %14 = vsyncpa [#allocation3], 0
    %15 = vsyncpa [#allocation6], 0
    %16 = vsyncpa [#allocation9], 0
    %17 = vsyncpa [#allocation4], 0
    // Predicated region
    $region2: #{tpu_custom_call.1} parent=1 // pred_check
      _
    $region3: #{tpu_custom_call.1} parent=1 // pred_check_branch
      %19 = sbr.rel (0) target = $region5
    $region4: #{tpu_custom_call.1} parent=1 // pred_region
      %s21 = ssub.s32 32, 32
      %22 = vsyncadd [#allocation3], %s21
      %s24 = sshll.u32 [#allocation2], 4
      %s25 = int_to_ptr.vmem [resolvable:$true] %s24
      %27 = dma.hbm_to_vmem [thread:$0]  %s0, 32, %s25, [#allocation3]
    $region5: #{tpu_custom_call.1} parent=1 // pred_fallthru
      _
    // Predicated region
    $region6: #{tpu_custom_call.1} parent=1 // pred_check
      _
    $region7: #{tpu_custom_call.1} parent=1 // pred_check_branch
      %29 = sbr.rel (0) target = $region9
    $region8: #{tpu_custom_call.1} parent=1 // pred_region
      _
    $region9: #{tpu_custom_call.1} parent=1 // pred_fallthru
      _
    // Predicated region
    $region10: #{tpu_custom_call.1} parent=1 // pred_check
      _
    $region11: #{tpu_custom_call.1} parent=1 // pred_check_branch
      %31 = sbr.rel (0) target = $region13
    $region12: #{tpu_custom_call.1} parent=1 // pred_region
      %s33 = ssub.s32 256, 256
      %34 = vsyncadd [#allocation6], %s33
      %s35 = sshll.u32 [#allocation5], 4
      %s36 = int_to_ptr.vmem [resolvable:$true] %s35
      %41 = dma.hbm_to_vmem [thread:$0]  %s2, 256, %s36, [#allocation6], 128, 128, 8
    $region13: #{tpu_custom_call.1} parent=1 // pred_fallthru
      _
    // Predicated region
    $region14: #{tpu_custom_call.1} parent=1 // pred_check
      _
    $region15: #{tpu_custom_call.1} parent=1 // pred_check_branch
      %43 = sbr.rel (0) target = $region17
    $region16: #{tpu_custom_call.1} parent=1 // pred_region
      %s45 = ssub.s32 256, 256
      %46 = vsyncadd [#allocation6], %s45
      %s47 = sshll.u32 [#allocation7], 4
      %s48 = int_to_ptr.vmem [resolvable:$true] %s47
      %53 = dma.hbm_to_vmem [thread:$0]  %s3, 256, %s48, [#allocation6], 128, 128, 8
    $region17: #{tpu_custom_call.1} parent=1 // pred_fallthru
      _
    // Predicated region
    $region18: #{tpu_custom_call.1} parent=1 // pred_check
      _
    $region19: #{tpu_custom_call.1} parent=1 // pred_check_branch
      %55 = sbr.rel (0) target = $region21
    $region20: #{tpu_custom_call.1} parent=1 // pred_region
      _
    $region21: #{tpu_custom_call.1} parent=1 // pred_fallthru
      _
    // Predicated region
    $region22: #{tpu_custom_call.1} parent=1 // pred_check
      _
    $region23: #{tpu_custom_call.1} parent=1 // pred_check_branch
      %57 = sbr.rel (0) target = $region25
    $region24: #{tpu_custom_call.1} parent=1 // pred_region
      %s59 = ssub.s32 4096, 4096
      %60 = vsyncadd [#allocation9], %s59
      %s61 = sshll.u32 [#allocation8], 4
      %s62 = int_to_ptr.vmem [resolvable:$true] %s61
      %67 = dma.hbm_to_vmem [thread:$0]  %s5, 4096, %s62, [#allocation9], 128, 128, 8
    $region25: #{tpu_custom_call.1} parent=1 // pred_fallthru
      _
    // Predicated region
    $region26: #{tpu_custom_call.1} parent=1 // pred_check
      _
    $region27: #{tpu_custom_call.1} parent=1 // pred_check_branch
      %69 = sbr.rel (0) target = $region29
    $region28: #{tpu_custom_call.1} parent=1 // pred_region
      _
    $region29: #{tpu_custom_call.1} parent=1 // pred_fallthru
      _
    // Predicated region
    $region30: #{tpu_custom_call.1} parent=1 // pred_check
      _
    $region31: #{tpu_custom_call.1} parent=1 // pred_check_branch
      %71 = sbr.rel (0) target = $region33
    $region32: #{tpu_custom_call.1} parent=1 // pred_region
      %s73 = ssub.s32 2048, 2048
      %74 = vsyncadd [#allocation9], %s73
      %s75 = sshll.u32 [#allocation10], 4
      %s76 = int_to_ptr.vmem [resolvable:$true] %s75
      %81 = dma.hbm_to_vmem [thread:$0]  %s7, 2048, %s76, [#allocation9], 64, 64, 4
    $region33: #{tpu_custom_call.1} parent=1 // pred_fallthru
      _
    // Predicated region
    $region34: #{tpu_custom_call.1} parent=1 // pred_check
      _
    $region35: #{tpu_custom_call.1} parent=1 // pred_check_branch
      %83 = sbr.rel (0) target = $region37
    $region36: #{tpu_custom_call.1} parent=1 // pred_region
      _
    $region37: #{tpu_custom_call.1} parent=1 // pred_fallthru
      _
    // Predicated region
    $region38: #{tpu_custom_call.1} parent=1 // pred_check
      _
    $region39: #{tpu_custom_call.1} parent=1 // pred_check_branch
      %85 = sbr.rel (0) target = $region41
    $region40: #{tpu_custom_call.1} parent=1 // pred_region
      %86 = dma.done [#allocation3], 32
    $region41: #{tpu_custom_call.1} parent=1 // pred_fallthru
      _
    // Predicated region
    $region42: #{tpu_custom_call.1} parent=1 // pred_check
      _
    $region43: #{tpu_custom_call.1} parent=1 // pred_check_branch
      %88 = sbr.rel (0) target = $region45
    $region44: #{tpu_custom_call.1} parent=1 // pred_region
      %89 = dma.done [#allocation6], 256
    $region45: #{tpu_custom_call.1} parent=1 // pred_fallthru
      _
    // Predicated region
    $region46: #{tpu_custom_call.1} parent=1 // pred_check
      _
    $region47: #{tpu_custom_call.1} parent=1 // pred_check_branch
      %91 = sbr.rel (0) target = $region49
    $region48: #{tpu_custom_call.1} parent=1 // pred_region
      %92 = dma.done [#allocation6], 256
    $region49: #{tpu_custom_call.1} parent=1 // pred_fallthru
      _
    // Predicated region
    $region50: #{tpu_custom_call.1} parent=1 // pred_check
      _
    $region51: #{tpu_custom_call.1} parent=1 // pred_check_branch
      %94 = sbr.rel (0) target = $region53
    $region52: #{tpu_custom_call.1} parent=1 // pred_region
      %95 = dma.done [#allocation9], 4096
    $region53: #{tpu_custom_call.1} parent=1 // pred_fallthru
      _
    // Predicated region
    $region54: #{tpu_custom_call.1} parent=1 // pred_check
      _
    $region55: #{tpu_custom_call.1} parent=1 // pred_check_branch
      %97 = sbr.rel (0) target = $region57
    $region56: #{tpu_custom_call.1} parent=1 // pred_region
      %98 = dma.done [#allocation9], 2048
    $region57: #{tpu_custom_call.1} parent=1 // pred_fallthru
      _
    %v100 = vld [vmem:[#allocation2] sm:$0x3]
    %v101 = vpack.c.bf16 %v100, %v100
    %v102 = vld [vmem:[%s1] sm:$0x3]
    %v103 = vpack.c.bf16 %v102, %v102
    %v104 = vld [vmem:[#allocation5] sm:$0xff]
    %v105 = vld [vmem:[#allocation5 + $0x8] sm:$0xff]
    %v106 = vld [vmem:[#allocation7] sm:$0xff]
    %v107 = vld [vmem:[#allocation7 + $0x8] sm:$0xff]
    %v110 = vunpack.c.l.b16 %v106
    %v111 = vunpack.c.h.b16 %v106
    %v112 = vunpack.c.l.b16 %v107
    %v113 = vunpack.c.h.b16 %v107
    %v114 = vpack.c.b16 %v112, %v110
    %v115 = vpack.c.b16 %v113, %v111
    %vm118 = vcmask 130048
    %v120 = vsel %vm118, %v103, 0
    %122 = vmatprep.subr.bf16.mxu0 %v115
    %123 = vmatpush1.bf16.msra.mxu0 %v114
    %124 = vmatprep.subr.bf16.mxu0 0
    %125 = vmatpush1.bf16.msra.mxu0 0
    %126 = vmatprep.subr.bf16.mxu0 0
    %127 = vmatpush1.bf16.msra.mxu0 0
    %128 = vmatprep.subr.bf16.mxu0 0
    %129 = vmatpush1.bf16.msra.mxu0 0
    %130 = vmatprep.subr.bf16.mxu0 0
    %131 = vmatpush1.bf16.msra.mxu0 0
    %132 = vmatprep.subr.bf16.mxu0 0
    %133 = vmatpush1.bf16.msra.mxu0 0
    %134 = vmatprep.subr.bf16.mxu0 0
    %135 = vmatpush1.bf16.msra.mxu0 0
    %136 = vmatprep.subr.bf16.mxu0 0
    %137 = vmatpush1.bf16.msra.mxu0 0
    %138 = vmatprep.subr.bf16.mxu0 0
    %139 = vmatpush1.bf16.msra.mxu0 0
    %140 = vmatprep.subr.bf16.mxu0 0
    %141 = vmatpush1.bf16.msra.mxu0 0
    %142 = vmatprep.subr.bf16.mxu0 0
    %143 = vmatpush1.bf16.msra.mxu0 0
    %144 = vmatprep.subr.bf16.mxu0 0
    %145 = vmatpush1.bf16.msra.mxu0 0
    %146 = vmatprep.subr.bf16.mxu0 0
    %147 = vmatpush1.bf16.msra.mxu0 0
    %148 = vmatprep.subr.bf16.mxu0 0
    %149 = vmatpush1.bf16.msra.mxu0 0
    %150 = vmatprep.subr.bf16.mxu0 0
    %151 = vmatpush1.bf16.msra.mxu0 0
    %152 = vmatprep.subr.bf16.mxu0 0
    %153 = vmatpush1.bf16.msra.mxu0 0
    %154 = vmatprep.mubr.bf16.mxu0 0
    %155 = vmatmul.mubr.bf16.gmra.mrb[0].mxu0 %v120
    %v156 = vpop.f32.mrb[0].mxu0
    %v157 = vadd.f32 0.0, %v156
    %v158 = vpop.f32.mrb[0].mxu0
    %v159 = vadd.f32 0.0, %v158
    %v160 = vpop.f32.mrb[0].mxu0
    %v161 = vpop.f32.mrb[0].mxu0
    %162 = vdwg.mxu0
    %v165 = vunpack.c.l.b16 %v104
    %v166 = vunpack.c.h.b16 %v104
    %v167 = vunpack.c.l.b16 %v105
    %v168 = vunpack.c.h.b16 %v105
    %v169 = vpack.c.b16 %v167, %v165
    %v170 = vpack.c.b16 %v168, %v166
    %v174 = vsel %vm118, %v101, 0
    %176 = vmatprep.subr.bf16.mxu0 %v170
    %177 = vmatpush1.bf16.msra.mxu0 %v169
    %178 = vmatprep.subr.bf16.mxu0 0
    %179 = vmatpush1.bf16.msra.mxu0 0
    %180 = vmatprep.subr.bf16.mxu0 0
    %181 = vmatpush1.bf16.msra.mxu0 0
    %182 = vmatprep.subr.bf16.mxu0 0
    %183 = vmatpush1.bf16.msra.mxu0 0
    %184 = vmatprep.subr.bf16.mxu0 0
    %185 = vmatpush1.bf16.msra.mxu0 0
    %186 = vmatprep.subr.bf16.mxu0 0
    %187 = vmatpush1.bf16.msra.mxu0 0
    %188 = vmatprep.subr.bf16.mxu0 0
    %189 = vmatpush1.bf16.msra.mxu0 0
    %190 = vmatprep.subr.bf16.mxu0 0
    %191 = vmatpush1.bf16.msra.mxu0 0
    %192 = vmatprep.subr.bf16.mxu0 0
    %193 = vmatpush1.bf16.msra.mxu0 0
    %194 = vmatprep.subr.bf16.mxu0 0
    %195 = vmatpush1.bf16.msra.mxu0 0
    %196 = vmatprep.subr.bf16.mxu0 0
    %197 = vmatpush1.bf16.msra.mxu0 0
    %198 = vmatprep.subr.bf16.mxu0 0
    %199 = vmatpush1.bf16.msra.mxu0 0
    %200 = vmatprep.subr.bf16.mxu0 0
    %201 = vmatpush1.bf16.msra.mxu0 0
    %202 = vmatprep.subr.bf16.mxu0 0
    %203 = vmatpush1.bf16.msra.mxu0 0
    %204 = vmatprep.subr.bf16.mxu0 0
    %205 = vmatpush1.bf16.msra.mxu0 0
    %206 = vmatprep.subr.bf16.mxu0 0
    %207 = vmatpush1.bf16.msra.mxu0 0
    %208 = vmatprep.mubr.bf16.mxu0 0
    %209 = vmatmul.mubr.bf16.gmra.mrb[0].mxu0 %v174
    %v210 = vpop.f32.mrb[0].mxu0
    %v211 = vadd.f32 %v157, %v210
    %v212 = vpop.f32.mrb[0].mxu0
    %v213 = vadd.f32 %v159, %v212
    %v214 = vpop.f32.mrb[0].mxu0
    %v215 = vpop.f32.mrb[0].mxu0
    %216 = vdwg.mxu0
    %v217 = vld [vmem:[%s4] sm:$0x3]
    %v219 = vlaneseq
    %v220 = vshrl.u32 %v219, 7
    %v221 = vsub.s32 0, %v220
    %v222 = vrot.slane %v217, %v221
    %v223 = vlaneseq
    %v224 = vshrl.u32 %v223, 7
    %v225 = vsub.s32 1, %v224
    %v226 = vrot.slane %v217, %v225
    %v229 = vadd.f32 %v211, %v222
    %v230 = vadd.f32 %v213, %v226
    %v231 = vmax.f32 %v229, 0.0
    %v232 = vmax.f32 %v230, 0.0
    %v233 = vpack.c.bf16 %v231, %v231
    %v234 = vpack.c.bf16 %v232, %v232
    %v235 = vld [vmem:[#allocation8] sm:$0xff]
    %v236 = vld [vmem:[#allocation8 + $0x8] sm:$0xff]
    %v237 = vld [vmem:[#allocation8 + $0x10] sm:$0xff]
    %v238 = vld [vmem:[#allocation8 + $0x18] sm:$0xff]
    %v239 = vld [vmem:[#allocation8 + $0x20] sm:$0xff]
    %v240 = vld [vmem:[#allocation8 + $0x28] sm:$0xff]
    %v241 = vld [vmem:[#allocation8 + $0x30] sm:$0xff]
    %v242 = vld [vmem:[#allocation8 + $0x38] sm:$0xff]
    %v243 = vld [vmem:[#allocation8 + $0x40] sm:$0xff]
    %v244 = vld [vmem:[#allocation8 + $0x48] sm:$0xff]
    %v245 = vld [vmem:[#allocation8 + $0x50] sm:$0xff]
    %v246 = vld [vmem:[#allocation8 + $0x58] sm:$0xff]
    %v247 = vld [vmem:[#allocation8 + $0x60] sm:$0xff]
    %v248 = vld [vmem:[#allocation8 + $0x68] sm:$0xff]
    %v249 = vld [vmem:[#allocation8 + $0x70] sm:$0xff]
    %v250 = vld [vmem:[#allocation8 + $0x78] sm:$0xff]
    %v251 = vld [vmem:[#allocation8 + $0x80] sm:$0xff]
    %v252 = vld [vmem:[#allocation8 + $0x88] sm:$0xff]
    %v253 = vld [vmem:[#allocation8 + $0x90] sm:$0xff]
    %v254 = vld [vmem:[#allocation8 + $0x98] sm:$0xff]
    %v255 = vld [vmem:[#allocation8 + $0xa0] sm:$0xff]
    %v256 = vld [vmem:[#allocation8 + $0xa8] sm:$0xff]
    %v257 = vld [vmem:[#allocation8 + $0xb0] sm:$0xff]
    %v258 = vld [vmem:[#allocation8 + $0xb8] sm:$0xff]
    %v259 = vld [vmem:[#allocation8 + $0xc0] sm:$0xff]
    %v260 = vld [vmem:[#allocation8 + $0xc8] sm:$0xff]
    %v261 = vld [vmem:[#allocation8 + $0xd0] sm:$0xff]
    %v262 = vld [vmem:[#allocation8 + $0xd8] sm:$0xff]
    %v263 = vld [vmem:[#allocation8 + $0xe0] sm:$0xff]
    %v264 = vld [vmem:[#allocation8 + $0xe8] sm:$0xff]
    %v265 = vld [vmem:[#allocation8 + $0xf0] sm:$0xff]
    %v266 = vld [vmem:[#allocation8 + $0xf8] sm:$0xff]
    %v267 = vld [vmem:[%s6] sm:$0x3]
    %v269 = vlaneseq
    %v270 = vshrl.u32 %v269, 7
    %v271 = vsub.s32 0, %v270
    %v272 = vrot.slane %v267, %v271
    %v273 = vlaneseq
    %v274 = vshrl.u32 %v273, 7
    %v275 = vsub.s32 1, %v274
    %v276 = vrot.slane %v267, %v275
    %v311 = vunpack.c.l.b16 %v235
    %v312 = vunpack.c.h.b16 %v235
    %v313 = vunpack.c.l.b16 %v236
    %v314 = vunpack.c.h.b16 %v236
    %v315 = vunpack.c.l.b16 %v237
    %v316 = vunpack.c.h.b16 %v237
    %v317 = vunpack.c.l.b16 %v238
    %v318 = vunpack.c.h.b16 %v238
    %v319 = vunpack.c.l.b16 %v239
    %v320 = vunpack.c.h.b16 %v239
    %v321 = vunpack.c.l.b16 %v240
    %v322 = vunpack.c.h.b16 %v240
    %v323 = vunpack.c.l.b16 %v241
    %v324 = vunpack.c.h.b16 %v241
    %v325 = vunpack.c.l.b16 %v242
    %v326 = vunpack.c.h.b16 %v242
    %v327 = vunpack.c.l.b16 %v243
    %v328 = vunpack.c.h.b16 %v243
    %v329 = vunpack.c.l.b16 %v244
    %v330 = vunpack.c.h.b16 %v244
    %v331 = vunpack.c.l.b16 %v245
    %v332 = vunpack.c.h.b16 %v245
    %v333 = vunpack.c.l.b16 %v246
    %v334 = vunpack.c.h.b16 %v246
    %v335 = vunpack.c.l.b16 %v247
    %v336 = vunpack.c.h.b16 %v247
    %v337 = vunpack.c.l.b16 %v248
    %v338 = vunpack.c.h.b16 %v248
    %v339 = vunpack.c.l.b16 %v249
    %v340 = vunpack.c.h.b16 %v249
    %v341 = vunpack.c.l.b16 %v250
    %v342 = vunpack.c.h.b16 %v250
    %v343 = vunpack.c.l.b16 %v251
    %v344 = vunpack.c.h.b16 %v251
    %v345 = vunpack.c.l.b16 %v252
    %v346 = vunpack.c.h.b16 %v252
    %v347 = vunpack.c.l.b16 %v253
    %v348 = vunpack.c.h.b16 %v253
    %v349 = vunpack.c.l.b16 %v254
    %v350 = vunpack.c.h.b16 %v254
    %v351 = vunpack.c.l.b16 %v255
    %v352 = vunpack.c.h.b16 %v255
    %v353 = vunpack.c.l.b16 %v256
    %v354 = vunpack.c.h.b16 %v256
    %v355 = vunpack.c.l.b16 %v257
    %v356 = vunpack.c.h.b16 %v257
    %v357 = vunpack.c.l.b16 %v258
    %v358 = vunpack.c.h.b16 %v258
    %v359 = vunpack.c.l.b16 %v259
    %v360 = vunpack.c.h.b16 %v259
    %v361 = vunpack.c.l.b16 %v260
    %v362 = vunpack.c.h.b16 %v260
    %v363 = vunpack.c.l.b16 %v261
    %v364 = vunpack.c.h.b16 %v261
    %v365 = vunpack.c.l.b16 %v262
    %v366 = vunpack.c.h.b16 %v262
    %v367 = vunpack.c.l.b16 %v263
    %v368 = vunpack.c.h.b16 %v263
    %v369 = vunpack.c.l.b16 %v264
    %v370 = vunpack.c.h.b16 %v264
    %v371 = vunpack.c.l.b16 %v265
    %v372 = vunpack.c.h.b16 %v265
    %v373 = vunpack.c.l.b16 %v266
    %v374 = vunpack.c.h.b16 %v266
    %v375 = vpack.c.b16 %v313, %v311
    %v376 = vpack.c.b16 %v314, %v312
    %v377 = vpack.c.b16 %v317, %v315
    %v378 = vpack.c.b16 %v318, %v316
    %v379 = vpack.c.b16 %v321, %v319
    %v380 = vpack.c.b16 %v322, %v320
    %v381 = vpack.c.b16 %v325, %v323
    %v382 = vpack.c.b16 %v326, %v324
    %v383 = vpack.c.b16 %v329, %v327
    %v384 = vpack.c.b16 %v330, %v328
    %v385 = vpack.c.b16 %v333, %v331
    %v386 = vpack.c.b16 %v334, %v332
    %v387 = vpack.c.b16 %v337, %v335
    %v388 = vpack.c.b16 %v338, %v336
    %v389 = vpack.c.b16 %v341, %v339
    %v390 = vpack.c.b16 %v342, %v340
    %v391 = vpack.c.b16 %v345, %v343
    %v392 = vpack.c.b16 %v346, %v344
    %v393 = vpack.c.b16 %v349, %v347
    %v394 = vpack.c.b16 %v350, %v348
    %v395 = vpack.c.b16 %v353, %v351
    %v396 = vpack.c.b16 %v354, %v352
    %v397 = vpack.c.b16 %v357, %v355
    %v398 = vpack.c.b16 %v358, %v356
    %v399 = vpack.c.b16 %v361, %v359
    %v400 = vpack.c.b16 %v362, %v360
    %v401 = vpack.c.b16 %v365, %v363
    %v402 = vpack.c.b16 %v366, %v364
    %v403 = vpack.c.b16 %v369, %v367
    %v404 = vpack.c.b16 %v370, %v368
    %v405 = vpack.c.b16 %v373, %v371
    %v406 = vpack.c.b16 %v374, %v372
    %439 = vmatprep.subr.bf16.mxu0 %v376
    %440 = vmatpush1.bf16.msra.mxu0 %v375
    %441 = vmatprep.subr.bf16.mxu0 %v378
    %442 = vmatpush1.bf16.msra.mxu0 %v377
    %443 = vmatprep.subr.bf16.mxu0 %v380
    %444 = vmatpush1.bf16.msra.mxu0 %v379
    %445 = vmatprep.subr.bf16.mxu0 %v382
    %446 = vmatpush1.bf16.msra.mxu0 %v381
    %447 = vmatprep.subr.bf16.mxu0 %v384
    %448 = vmatpush1.bf16.msra.mxu0 %v383
    %449 = vmatprep.subr.bf16.mxu0 %v386
    %450 = vmatpush1.bf16.msra.mxu0 %v385
    %451 = vmatprep.subr.bf16.mxu0 %v388
    %452 = vmatpush1.bf16.msra.mxu0 %v387
    %453 = vmatprep.subr.bf16.mxu0 %v390
    %454 = vmatpush1.bf16.msra.mxu0 %v389
    %455 = vmatprep.subr.bf16.mxu0 %v392
    %456 = vmatpush1.bf16.msra.mxu0 %v391
    %457 = vmatprep.subr.bf16.mxu0 %v394
    %458 = vmatpush1.bf16.msra.mxu0 %v393
    %459 = vmatprep.subr.bf16.mxu0 %v396
    %460 = vmatpush1.bf16.msra.mxu0 %v395
    %461 = vmatprep.subr.bf16.mxu0 %v398
    %462 = vmatpush1.bf16.msra.mxu0 %v397
    %463 = vmatprep.subr.bf16.mxu0 %v400
    %464 = vmatpush1.bf16.msra.mxu0 %v399
    %465 = vmatprep.subr.bf16.mxu0 %v402
    %466 = vmatpush1.bf16.msra.mxu0 %v401
    %467 = vmatprep.subr.bf16.mxu0 %v404
    %468 = vmatpush1.bf16.msra.mxu0 %v403
    %469 = vmatprep.subr.bf16.mxu0 %v406
    %470 = vmatpush1.bf16.msra.mxu0 %v405
    %471 = vmatprep.mubr.bf16.mxu0 %v234
    %472 = vmatmul.mubr.bf16.gmra.mrb[0].mxu0 %v233
    %v473 = vpop.f32.mrb[0].mxu0
    %v474 = vadd.f32 %v272, %v473
    %v475 = vpop.f32.mrb[0].mxu0
    %v476 = vadd.f32 %v276, %v475
    %v477 = vpop.f32.mrb[0].mxu0
    %v478 = vpop.f32.mrb[0].mxu0
    %479 = vdwg.mxu0
    %v480 = vmax.f32 %v474, 0.0
    %v481 = vmax.f32 %v476, 0.0
    %v482 = vpack.c.bf16 %v480, %v480
    %v483 = vpack.c.bf16 %v481, %v481
    %v484 = vld [vmem:[#allocation10] sm:$0xf]
    %v485 = vld [vmem:[#allocation10 + $0x4] sm:$0xf]
    %v486 = vld [vmem:[#allocation10 + $0x8] sm:$0xf]
    %v487 = vld [vmem:[#allocation10 + $0xc] sm:$0xf]
    %v488 = vld [vmem:[#allocation10 + $0x10] sm:$0xf]
    %v489 = vld [vmem:[#allocation10 + $0x14] sm:$0xf]
    %v490 = vld [vmem:[#allocation10 + $0x18] sm:$0xf]
    %v491 = vld [vmem:[#allocation10 + $0x1c] sm:$0xf]
    %v492 = vld [vmem:[#allocation10 + $0x20] sm:$0xf]
    %v493 = vld [vmem:[#allocation10 + $0x24] sm:$0xf]
    %v494 = vld [vmem:[#allocation10 + $0x28] sm:$0xf]
    %v495 = vld [vmem:[#allocation10 + $0x2c] sm:$0xf]
    %v496 = vld [vmem:[#allocation10 + $0x30] sm:$0xf]
    %v497 = vld [vmem:[#allocation10 + $0x34] sm:$0xf]
    %v498 = vld [vmem:[#allocation10 + $0x38] sm:$0xf]
    %v499 = vld [vmem:[#allocation10 + $0x3c] sm:$0xf]
    %v500 = vld [vmem:[#allocation10 + $0x40] sm:$0xf]
    %v501 = vld [vmem:[#allocation10 + $0x44] sm:$0xf]
    %v502 = vld [vmem:[#allocation10 + $0x48] sm:$0xf]
    %v503 = vld [vmem:[#allocation10 + $0x4c] sm:$0xf]
    %v504 = vld [vmem:[#allocation10 + $0x50] sm:$0xf]
    %v505 = vld [vmem:[#allocation10 + $0x54] sm:$0xf]
    %v506 = vld [vmem:[#allocation10 + $0x58] sm:$0xf]
    %v507 = vld [vmem:[#allocation10 + $0x5c] sm:$0xf]
    %v508 = vld [vmem:[#allocation10 + $0x60] sm:$0xf]
    %v509 = vld [vmem:[#allocation10 + $0x64] sm:$0xf]
    %v510 = vld [vmem:[#allocation10 + $0x68] sm:$0xf]
    %v511 = vld [vmem:[#allocation10 + $0x6c] sm:$0xf]
    %v512 = vld [vmem:[#allocation10 + $0x70] sm:$0xf]
    %v513 = vld [vmem:[#allocation10 + $0x74] sm:$0xf]
    %v514 = vld [vmem:[#allocation10 + $0x78] sm:$0xf]
    %v515 = vld [vmem:[#allocation10 + $0x7c] sm:$0xf]
    %v516 = vld [vmem:[%s8] sm:$0x1]
    %v518 = vlaneseq
    %v519 = vshrl.u32 %v518, 7
    %v520 = vsub.s32 0, %v519
    %v521 = vrot.slane %v516, %v520
    %v555 = vunpack.c.l.b16 %v484
    %v556 = vunpack.c.l.b16 %v485
    %v557 = vunpack.c.l.b16 %v486
    %v558 = vunpack.c.l.b16 %v487
    %v559 = vunpack.c.l.b16 %v488
    %v560 = vunpack.c.l.b16 %v489
    %v561 = vunpack.c.l.b16 %v490
    %v562 = vunpack.c.l.b16 %v491
    %v563 = vunpack.c.l.b16 %v492
    %v564 = vunpack.c.l.b16 %v493
    %v565 = vunpack.c.l.b16 %v494
    %v566 = vunpack.c.l.b16 %v495
    %v567 = vunpack.c.l.b16 %v496
    %v568 = vunpack.c.l.b16 %v497
    %v569 = vunpack.c.l.b16 %v498
    %v570 = vunpack.c.l.b16 %v499
    %v571 = vunpack.c.l.b16 %v500
    %v572 = vunpack.c.l.b16 %v501
    %v573 = vunpack.c.l.b16 %v502
    %v574 = vunpack.c.l.b16 %v503
    %v575 = vunpack.c.l.b16 %v504
    %v576 = vunpack.c.l.b16 %v505
    %v577 = vunpack.c.l.b16 %v506
    %v578 = vunpack.c.l.b16 %v507
    %v579 = vunpack.c.l.b16 %v508
    %v580 = vunpack.c.l.b16 %v509
    %v581 = vunpack.c.l.b16 %v510
    %v582 = vunpack.c.l.b16 %v511
    %v583 = vunpack.c.l.b16 %v512
    %v584 = vunpack.c.l.b16 %v513
    %v585 = vunpack.c.l.b16 %v514
    %v586 = vunpack.c.l.b16 %v515
    %v587 = vpack.c.b16 %v556, %v555
    %v588 = vpack.c.b16 %v558, %v557
    %v589 = vpack.c.b16 %v560, %v559
    %v590 = vpack.c.b16 %v562, %v561
    %v591 = vpack.c.b16 %v564, %v563
    %v592 = vpack.c.b16 %v566, %v565
    %v593 = vpack.c.b16 %v568, %v567
    %v594 = vpack.c.b16 %v570, %v569
    %v595 = vpack.c.b16 %v572, %v571
    %v596 = vpack.c.b16 %v574, %v573
    %v597 = vpack.c.b16 %v576, %v575
    %v598 = vpack.c.b16 %v578, %v577
    %v599 = vpack.c.b16 %v580, %v579
    %v600 = vpack.c.b16 %v582, %v581
    %v601 = vpack.c.b16 %v584, %v583
    %v602 = vpack.c.b16 %v586, %v585
    %619 = vmatprep.subr.bf16.mxu0 0
    %620 = vmatpush1.bf16.msra.mxu0 %v587
    %621 = vmatprep.subr.bf16.mxu0 0
    %622 = vmatpush1.bf16.msra.mxu0 %v588
    %623 = vmatprep.subr.bf16.mxu0 0
    %624 = vmatpush1.bf16.msra.mxu0 %v589
    %625 = vmatprep.subr.bf16.mxu0 0
    %626 = vmatpush1.bf16.msra.mxu0 %v590
    %627 = vmatprep.subr.bf16.mxu0 0
    %628 = vmatpush1.bf16.msra.mxu0 %v591
    %629 = vmatprep.subr.bf16.mxu0 0
    %630 = vmatpush1.bf16.msra.mxu0 %v592
    %631 = vmatprep.subr.bf16.mxu0 0
    %632 = vmatpush1.bf16.msra.mxu0 %v593
    %633 = vmatprep.subr.bf16.mxu0 0
    %634 = vmatpush1.bf16.msra.mxu0 %v594
    %635 = vmatprep.subr.bf16.mxu0 0
    %636 = vmatpush1.bf16.msra.mxu0 %v595
    %637 = vmatprep.subr.bf16.mxu0 0
    %638 = vmatpush1.bf16.msra.mxu0 %v596
    %639 = vmatprep.subr.bf16.mxu0 0
    %640 = vmatpush1.bf16.msra.mxu0 %v597
    %641 = vmatprep.subr.bf16.mxu0 0
    %642 = vmatpush1.bf16.msra.mxu0 %v598
    %643 = vmatprep.subr.bf16.mxu0 0
    %644 = vmatpush1.bf16.msra.mxu0 %v599
    %645 = vmatprep.subr.bf16.mxu0 0
    %646 = vmatpush1.bf16.msra.mxu0 %v600
    %647 = vmatprep.subr.bf16.mxu0 0
    %648 = vmatpush1.bf16.msra.mxu0 %v601
    %649 = vmatprep.subr.bf16.mxu0 0
    %650 = vmatpush1.bf16.msra.mxu0 %v602
    %651 = vmatprep.mubr.bf16.mxu0 %v483
    %652 = vmatmul.mubr.bf16.gmra.mrb[0].mxu0 %v482
    %v653 = vpop.f32.mrb[0].mxu0
    %v654 = vadd.f32 %v521, %v653
    %v655 = vpop.f32.mrb[0].mxu0
    %v656 = vpop.f32.mrb[0].mxu0
    %v657 = vpop.f32.mrb[0].mxu0
    %658 = vdwg.mxu0
    %v659 = vmax.f32 %v654, 0.0
    %660 = vst [vmem:[#allocation11] sm:$0x3] %v659
    // Predicated region
    $region58: #{tpu_custom_call.1} parent=1 // pred_check
      _
    $region59: #{tpu_custom_call.1} parent=1 // pred_check_branch
      %662 = sbr.rel (0) target = $region61
    $region60: #{tpu_custom_call.1} parent=1 // pred_region
      %s664 = ssub.s32 32, 32
      %665 = vsyncadd [#allocation4], %s664
      %s667 = sshll.u32 [#allocation11], 4
      %s668 = int_to_ptr.vmem [resolvable:$true] %s667
      %670 = dma.vmem_to_hbm [thread:$0]  %s668, 32, %s9, [#allocation4]
    $region61: #{tpu_custom_call.1} parent=1 // pred_fallthru
      _
    // Predicated region
    $region62: #{tpu_custom_call.1} parent=1 // pred_check
      _
    $region63: #{tpu_custom_call.1} parent=1 // pred_check_branch
      %672 = sbr.rel (0) target = $region65
    $region64: #{tpu_custom_call.1} parent=1 // pred_region
      %673 = dma.done [#allocation4], 32
    $region65: #{tpu_custom_call.1} parent=1 // pred_fallthru
      _
    %674 = vsyncpa [#allocation3], 1
    %675 = vsyncpa [#allocation6], 1
    %676 = vsyncpa [#allocation9], 1
    %677 = vsyncpa [#allocation4], 1

</llo_original>
